<compile_context>
chip_gen: v7x
topology: tpu7x:2x2x1
jax: 0.10.0
libtpu: 0.0.40
codegen_flags: <defaults>
</compile_context>

<pallas_src>
import jax
import jax.numpy as jnp
from jax.experimental import pallas as pl
from jax.experimental.pallas import tpu as pltpu


_LANE_CANDIDATES = (1024, 512, 256, 128)   # lane-dense last dim, multiple of 128
_DEFAULT_BLOCK_BYTES = 4 * 1024 * 1024     # ~4 MiB: >=85% HBM roofline on v5e/v6e
_V7X_BLOCK_BYTES = 8 * 1024 * 1024         # bigger blocks re-amortize per-step cost at 3.2 TB/s
_SPLIT_BYTES = 2 * 1024 * 1024             # tensors >= this get >= 2 grid steps (v7x dual-TC)
_TINY_BYPASS_BYTES = 4 * 1024              # below ~1 vreg plain XLA mul beats a pallas_call
                                           # (production could raise to ~256 KiB; kept small so
                                           # the demo below actually exercises the kernel)

_BLOCK_BYTES_CACHE = None


def _target_block_bytes() -> int:
    """Per-chip target block size. v7x gets bigger blocks; detection is best-effort."""
    global _BLOCK_BYTES_CACHE
    if _BLOCK_BYTES_CACHE is not None:
        return _BLOCK_BYTES_CACHE
    bb = _DEFAULT_BLOCK_BYTES
    try:
        info = pltpu.get_tpu_info()
        ver = getattr(info, "chip_version", None)
        if ver is None:
            ver = getattr(info, "version", None)
        if ver is not None:
            name = getattr(ver, "name", None) or str(ver)
            digits = "".join(ch for ch in str(name) if ch.isdigit())
            if digits and int(digits[0]) >= 7:
                bb = _V7X_BLOCK_BYTES
    except Exception:  # any failure -> conservative default (still in the good range)
        pass
    _BLOCK_BYTES_CACHE = bb
    return bb


def _sublane_pack(dtype) -> int:
    """Row-count multiple required for unpadded vreg layout: 8 f32, 16 bf16, 32 int8/fp8."""
    itemsize = jnp.dtype(dtype).itemsize
    if itemsize >= 4:
        return 8
    return 8 * (4 // itemsize)


def _compiler_params(tile_bytes: int) -> pltpu.CompilerParams:
    # 1 input + 1 output, double-buffered => ~4 * tile_bytes resident; add margin.
    vmem_limit = max(32 * 1024 * 1024, 4 * tile_bytes + 4 * 1024 * 1024)
    return pltpu.CompilerParams(
        dimension_semantics=("parallel",),
        vmem_limit_bytes=vmem_limit,
    )


def _square_kernel(x_ref, o_ref):
    x = x_ref[...]
    o_ref[...] = x * x


def _square_2d(x2d: jnp.ndarray, tile_rows: int) -> jnp.ndarray:
    rows, lane = x2d.shape
    n = x2d.size
    itemsize = jnp.dtype(x2d.dtype).itemsize
    tile_bytes = tile_rows * lane * itemsize
    return pl.pallas_call(
        _square_kernel,
        out_shape=jax.ShapeDtypeStruct((rows, lane), x2d.dtype),
        grid_spec=pltpu.PrefetchScalarGridSpec(
            num_scalar_prefetch=0,
            grid=(pl.cdiv(rows, tile_rows),),
            in_specs=[pl.BlockSpec((tile_rows, lane), lambda i: (i, 0))],
            out_specs=pl.BlockSpec((tile_rows, lane), lambda i: (i, 0)),
        ),
        compiler_params=_compiler_params(tile_bytes),
        cost_estimate=pl.CostEstimate(
            flops=n, transcendentals=0, bytes_accessed=2 * n * itemsize
        ),
    )(x2d)


def _square_1d(x_flat: jnp.ndarray, block: int) -> jnp.ndarray:
    # Ragged sizes: 1D blocks (multiple of pack*128); Pallas masks the partial
    # last block, so there is no pad and no trailing slice (1x read + 1x write).
    n = x_flat.shape[0]
    itemsize = jnp.dtype(x_flat.dtype).itemsize
    tile_bytes = block * itemsize
    return pl.pallas_call(
        _square_kernel,
        out_shape=jax.ShapeDtypeStruct((n,), x_flat.dtype),
        grid_spec=pltpu.PrefetchScalarGridSpec(
            num_scalar_prefetch=0,
            grid=(pl.cdiv(n, block),),
            in_specs=[pl.BlockSpec((block,), lambda i: (i,))],
            out_specs=pl.BlockSpec((block,), lambda i: (i,)),
        ),
        compiler_params=_compiler_params(tile_bytes),
        cost_estimate=pl.CostEstimate(
            flops=n, transcendentals=0, bytes_accessed=2 * n * itemsize
        ),
    )(x_flat)


def square(x: jnp.ndarray) -> jnp.ndarray:
    """Elementwise x*x via a Pallas TPU kernel. Preserves shape and dtype.

    Like the PyTorch reference, the multiply happens in the input dtype, so
    narrow integer / bf16 / fp8 inputs overflow / round exactly like torch.
    """
    orig_shape = x.shape
    n = x.size
    if n == 0:
        return x
    itemsize = jnp.dtype(x.dtype).itemsize

    # Tiny-input bypass: pallas_call launch/pipeline overhead would dominate.
    if n * itemsize < _TINY_BYPASS_BYTES:
        return x * x

    pack = _sublane_pack(x.dtype)
    block_bytes = _target_block_bytes()
    x_flat = jnp.ravel(x)

    # --- Fast path: size divisible by 128 -> lane-dense 2D view, no pad/slice. ---
    lane = None
    for cand in _LANE_CANDIDATES:          # prefer >= one full packed vreg of rows
        if n % cand == 0 and n // cand >= pack:
            lane = cand
            break
    if lane is None:
        for cand in _LANE_CANDIDATES:
            if n % cand == 0:
                lane = cand
                break

    if lane is not None:
        rows = n // lane
        if rows <= pack:
            # Whole array is a single short block; block == full dims is legal
            # even when rows is not a multiple of the packing factor.
            tile_rows = rows
        else:
            target_rows = max(pack, (block_bytes // (lane * itemsize)) // pack * pack)
            num_blocks = -(-rows // target_rows)
            # Keep >= 2 grid steps for mid/large tensors so both v7x TensorCores
            # stream half the tensor; costs one cheap extra step on 1-TC chips.
            if num_blocks == 1 and n * itemsize >= _SPLIT_BYTES and rows >= 2 * pack:
                num_blocks = 2
            # Balanced blocks (no near-empty masked tail), sublane-packed rows.
            tile_rows = -(-rows // num_blocks)
            tile_rows = min(-(-tile_rows // pack) * pack, rows)
        out2d = _square_2d(x_flat.reshape(rows, lane), tile_rows)
        return out2d.reshape(orig_shape)

    # --- Ragged path: size not a multiple of 128. ---
    lane_unit = pack * 128
    target_elems = max(lane_unit, (block_bytes // itemsize) // lane_unit * lane_unit)
    n_ceil = -(-n // lane_unit) * lane_unit
    block = min(target_elems, n_ceil)
    out_flat = _square_1d(x_flat, block)
    return out_flat.reshape(orig_shape)


if __name__ == "__main__":
    key = jax.random.PRNGKey(0)
    k0, k1, k2, k3, k4 = jax.random.split(key, 5)

    # Primary test: NCHW input (batch=2, ch=4, 16x16). 2048 f32 -> fast 2D path,
    # (8, 256) lane-dense view, single full block, no pad, no slice.
    x = jax.random.normal(k0, (2, 4, 16, 16), dtype=jnp.float32)
    y = jax.block_until_ready(square(x))
    assert y.shape == x.shape and y.dtype == x.dtype
    assert jnp.array_equal(y, x * x)

    # bf16 path: dtype-aware sublane packing (16-row multiple), single block.
    xb = jax.random.normal(k1, (4, 4, 16, 16), dtype=jnp.bfloat16)
    yb = jax.block_until_ready(square(xb))
    assert yb.shape == xb.shape and yb.dtype == xb.dtype
    assert jnp.array_equal(yb, xb * xb)

    # Ragged-size path (1155 elems, not a multiple of 128): 1D kernel with a
    # masked partial block -- no pad, no trailing slice.
    xr = jax.random.normal(k2, (3, 5, 7, 11), dtype=jnp.float32)
    yr = jax.block_until_ready(square(xr))
    assert yr.shape == xr.shape and jnp.array_equal(yr, xr * xr)

    # Multi-block path: 640000 f32 -> (625, 1024) view, balanced 2-step grid
    # (320-row blocks) with a masked partial last block.
    xm = jax.random.normal(k3, (10, 64000), dtype=jnp.float32)
    ym = jax.block_until_ready(square(xm))
    assert ym.shape == xm.shape and jnp.array_equal(ym, xm * xm)

    # Tiny-input bypass (sub-vreg): plain XLA multiply, no pallas_call.
    xt = jax.random.normal(k4, (5,), dtype=jnp.float32)
    yt = jax.block_until_ready(square(xt))
    assert yt.shape == xt.shape and jnp.array_equal(yt, xt * xt)

    print("KERNEL_OK")
</pallas_src>

<mosaic_0001>
module attributes {stable_mosaic.version = 11 : i64} {
  func.func @_square_kernel(%arg0: i32, %arg1: memref<8x256xf32, #tpu.memory_space<vmem>>, %arg2: memref<8x256xf32, #tpu.memory_space<vmem>>) attributes {dimension_semantics = [#tpu.dimension_semantics<parallel>], iteration_bounds = array<i64: 1>, scalar_prefetch = 0 : i64, scratch_operands = 0 : i64, tpu.core_type = #tpu.core_type<tc>, window_params = [{transform_indices = @transform_0, window_bounds = array<i64: 8, 256>}, {transform_indices = @transform_1, window_bounds = array<i64: 8, 256>}]} {
    %c0 = arith.constant 0 : index
    %c0_0 = arith.constant 0 : index
    %0 = vector.load %arg1[%c0, %c0_0] : memref<8x256xf32, #tpu.memory_space<vmem>>, vector<8x256xf32>
    %1 = arith.mulf %0, %0 : vector<8x256xf32>
    %c0_1 = arith.constant 0 : index
    %c0_2 = arith.constant 0 : index
    %2 = vector.load %arg2[%c0_1, %c0_2] : memref<8x256xf32, #tpu.memory_space<vmem>>, vector<8x256xf32>
    tpu.vector_store %arg2[%c0_1, %c0_2], %1 {strides = array<i32>} : memref<8x256xf32, #tpu.memory_space<vmem>>, vector<8x256xf32>,
    return
  }
  func.func @transform_0(%arg0: i32) -> (i32, i32) {
    %c0_i32 = arith.constant 0 : i32
    %c0_i32_0 = arith.constant 0 : i32
    return %arg0, %c0_i32 : i32, i32
  }
  func.func @transform_1(%arg0: i32) -> (i32, i32) {
    %c0_i32 = arith.constant 0 : i32
    %c0_i32_0 = arith.constant 0 : i32
    return %arg0, %c0_i32 : i32, i32
  }
}

</mosaic_0001>

<llo_original>
// kernel: tpu_custom_call.1
$region0: #{tpu_custom_call.1}
  #allocation0 [shape = 'u32[]', space=smem, size = 0x4, offset = 0x4, fixed_abs, tag = 'smem constant byte address 0x4 - core index']
  #allocation1 [shape = 'u32[144,128]{1,0:T(1,128)}', space=vmem, size = 0x12000, scoped, tag = 'internal scratch']
  %s0 = inlined_call_operand.hbm [shape: f32[8,256], index: 0, kind: input, shape index: {}]
  %s1 = inlined_call_operand.hbm [shape: f32[8,256], index: 1, kind: output, shape index: {}]
  %s2 = sld [smem:[#allocation0]]
  $region18: #{tpu_custom_call.1} parent=0
    _
  %s4 = ssub.s32 1, %s2
  %s5 = scalar_select 0, %s4, %s2
  $region1: #{tpu_custom_call.1} parent=0
    #allocation2 [shape = 'u8[8192]{0}', space=vmem, size = 0x2000, scoped, tag = 'input window, operand 0, single buffered']
    #allocation3 [shape = 's32[1]{0}', space=sflag, size = 0x4, scoped, tag = 'scoped memory for tpu_custom_call.1']
    #allocation4 [shape = 's32[1]{0}', space=sflag, size = 0x4, scoped, tag = 'scoped memory for tpu_custom_call.1']
    #allocation5 [shape = 'u8[8192]{0}', space=vmem, size = 0x2000, scoped, tag = 'output window, operand 0, single buffered']
    %6 = vsyncpa [#allocation3], 0
    %7 = vsyncpa [#allocation4], 0
    // Predicated region
    $region2: #{tpu_custom_call.1} parent=1 // pred_check
      _
    $region3: #{tpu_custom_call.1} parent=1 // pred_check_branch
      %9 = sbr.rel (0) target = $region5
    $region4: #{tpu_custom_call.1} parent=1 // pred_region
      %s11 = ssub.s32 256, 256
      %12 = vsyncadd [#allocation3], %s11
      %s14 = sshll.u32 [#allocation2], 4
      %s15 = int_to_ptr.vmem [resolvable:$true] %s14
      %17 = dma.hbm_to_vmem [thread:$0]  %s0, 256, %s15, [#allocation3]
    $region5: #{tpu_custom_call.1} parent=1 // pred_fallthru
      _
    // Predicated region
    $region6: #{tpu_custom_call.1} parent=1 // pred_check
      _
    $region7: #{tpu_custom_call.1} parent=1 // pred_check_branch
      %19 = sbr.rel (0) target = $region9
    $region8: #{tpu_custom_call.1} parent=1 // pred_region
      %20 = dma.done [#allocation3], 256
    $region9: #{tpu_custom_call.1} parent=1 // pred_fallthru
      _
    %v21 = vld [vmem:[#allocation2] sm:$0xff]
    %v22 = vld [vmem:[#allocation2 + $0x8] sm:$0xff]
    %v23 = vmul.f32 %v21, %v21
    %v24 = vmul.f32 %v22, %v22
    %25 = vst [vmem:[#allocation5] sm:$0xff] %v23
    %26 = vst [vmem:[#allocation5 + $0x8] sm:$0xff] %v24
    // Predicated region
    $region10: #{tpu_custom_call.1} parent=1 // pred_check
      _
    $region11: #{tpu_custom_call.1} parent=1 // pred_check_branch
      %28 = sbr.rel (0) target = $region13
    $region12: #{tpu_custom_call.1} parent=1 // pred_region
      %s30 = ssub.s32 256, 256
      %31 = vsyncadd [#allocation4], %s30
      %s33 = sshll.u32 [#allocation5], 4
      %s34 = int_to_ptr.vmem [resolvable:$true] %s33
      %36 = dma.vmem_to_hbm [thread:$0]  %s34, 256, %s1, [#allocation4]
    $region13: #{tpu_custom_call.1} parent=1 // pred_fallthru
      _
    // Predicated region
    $region14: #{tpu_custom_call.1} parent=1 // pred_check
      _
    $region15: #{tpu_custom_call.1} parent=1 // pred_check_branch
      %38 = sbr.rel (0) target = $region17
    $region16: #{tpu_custom_call.1} parent=1 // pred_region
      %39 = dma.done [#allocation4], 256
    $region17: #{tpu_custom_call.1} parent=1 // pred_fallthru
      _
    %40 = vsyncpa [#allocation3], 1
    %41 = vsyncpa [#allocation4], 1

</llo_original>
